<compile_context>
chip_gen: v7x
topology: tpu7x:2x2x1
jax: 0.10.0
libtpu: 0.0.40
codegen_flags: <defaults>
</compile_context>

<pallas_src>
import functools
import math

import jax
import jax.numpy as jnp
from jax import lax
from jax.experimental import pallas as pl
from jax.experimental.pallas import tpu as pltpu

_LANES = 128
_SUBLANE_ALIGN = 32                       # covers f32(8) / bf16(16) / int8,bool(32)
_MAX_TILE_ROWS = 16384                    # absolute cap on rows per grid step
_INPUT_VMEM_BUDGET = 16 * 1024 * 1024     # double-buffered input tiles (both operands)
_CHUNK_ELEMS = 128 * 1024                 # ~512 KiB f32 per live elementwise temporary
_SPLIT_MIN_ROWS = 256                     # prefer >=2 grid steps above this many rows
_VMEM_LIMIT_BYTES = 40 * 1024 * 1024      # fits v5e/v6e (128 MiB) and v7x (64 MiB)


def _cdiv(a, b):
    return -(-a // b)


def _round_up(n, m):
    return _cdiv(n, m) * m


def _round_down(n, m):
    return (n // m) * m


def _chunk_focal_sum(x_raw, t_raw, row_iota, limit, *, gamma, alpha):
    """Focal loss on one (rows, lanes) chunk, summed over rows -> (1, lanes).

    Rows with index >= `limit` are outside the logical array (stale VMEM in a
    partial block); they are zeroed with a select, which also squashes any
    NaN/Inf garbage they may contain.
    """
    x = x_raw.astype(jnp.float32)
    t = t_raw.astype(jnp.float32)

    # exp(-|x|) is shared by the stable BCE term and the sigmoid (single EUP exp).
    e = jnp.exp(-jnp.abs(x))
    inv_1pe = 1.0 / (1.0 + e)

    # BCEWithLogitsLoss(reduction='none'):  max(x,0) - x*t + log1p(exp(-|x|))
    bce = jnp.maximum(x, 0.0) - x * t + jnp.log1p(e)

    # sigmoid(x) = 1/(1+e) for x >= 0,  e/(1+e) for x < 0
    p = jnp.where(x >= 0.0, inv_1pe, e * inv_1pe)

    if not gamma:                          # matches `if self._gamma:` in PyTorch
        focal = bce
    else:
        # 1 - p_t = 1 - [t*p + (1-t)*(1-p)] = p + t - 2*p*t   (exact for soft labels)
        omp = p + t - 2.0 * (p * t)
        g = float(gamma)
        if g == int(g) and 1.0 <= g <= 4.0:
            # Small integer gamma (incl. default 2.0): repeated VPU multiply
            # instead of pow -> exp(g*log(y)) on the single EUP slot.
            mod = omp
            for _ in range(int(g) - 1):
                mod = mod * omp
        else:
            mod = jnp.power(omp, jnp.float32(g))
        focal = mod * bce

    if alpha is not None:
        a = float(alpha)
        # t*a + (1-t)*(1-a) == (1-a) + t*(2a-1)   (exact for soft labels)
        focal = ((1.0 - a) + t * (2.0 * a - 1.0)) * focal

    focal = jnp.where(row_iota < limit, focal, 0.0)
    return jnp.sum(focal, axis=0, keepdims=True)


def _focal_loss_kernel(pred_ref, targ_ref, out_ref, *, gamma, alpha,
                       total_rows, chunk_rows):
    tile_rows, lanes = pred_ref.shape
    # Rows of this tile that lie inside the logical array (the last tile may be
    # partial; its trailing rows are stale VMEM and must not contribute).
    valid = total_rows - pl.program_id(0) * tile_rows

    num_full, rem = divmod(tile_rows, chunk_rows)
    if num_full == 1 and rem == 0:
        num_full, rem = 0, tile_rows       # single full-tile evaluation

    acc = jnp.zeros((1, lanes), jnp.float32)

    if num_full > 0:
        row_iota = lax.broadcasted_iota(jnp.int32, (chunk_rows, lanes), 0)

        def body(c, acc):
            r0 = pl.multiple_of(c * chunk_rows, chunk_rows)
            x = pred_ref[pl.ds(r0, chunk_rows), :]
            t = targ_ref[pl.ds(r0, chunk_rows), :]
            return acc + _chunk_focal_sum(x, t, row_iota, valid - r0,
                                          gamma=gamma, alpha=alpha)

        acc = lax.fori_loop(0, num_full, body, acc)

    if rem > 0:
        r0 = num_full * chunk_rows          # static
        x = pred_ref[pl.ds(r0, rem), :]
        t = targ_ref[pl.ds(r0, rem), :]
        row_iota = lax.broadcasted_iota(jnp.int32, (rem, lanes), 0)
        acc = acc + _chunk_focal_sum(x, t, row_iota, valid - r0,
                                     gamma=gamma, alpha=alpha)

    out_ref[...] = acc


@functools.partial(jax.jit, static_argnames=("gamma", "alpha"))
def focal_loss(prediction, target, gamma=2.0, alpha=None):
    """Mean sigmoid focal loss; forward semantics match the PyTorch FocalLoss."""
    assert prediction.shape == target.shape
    total = math.prod(prediction.shape)

    # Copy-free 2-D view (reshape of a contiguous array is metadata-only):
    #  * lane-dense (total//128, 128) when the element count allows it,
    #  * otherwise (prod(leading dims), last_dim).
    if total % _LANES == 0:
        rows, lanes = total // _LANES, _LANES
    else:
        lanes = prediction.shape[-1]
        rows = total // lanes
    pred2d = prediction.reshape(rows, lanes)     # native dtype, no upcast, no pad
    targ2d = target.reshape(rows, lanes)

    lanes_padded = _round_up(lanes, _LANES)

    # Rows per grid step, bounded so the double-buffered input tiles stay within
    # the VMEM budget at the *native* input width.
    row_bytes = lanes_padded * 2 * (pred2d.dtype.itemsize + targ2d.dtype.itemsize)
    budget_rows = max(_SUBLANE_ALIGN,
                      _round_down(_INPUT_VMEM_BUDGET // row_bytes, _SUBLANE_ALIGN))
    budget_rows = min(budget_rows, _MAX_TILE_ROWS)

    if rows > budget_rows:
        n = _cdiv(rows, budget_rows)
        tile_rows = _round_up(_cdiv(rows, n), _SUBLANE_ALIGN)   # balanced tiles
    elif rows >= _SPLIT_MIN_ROWS:
        # Keep >=2 grid steps so the "parallel" axis can split across the two
        # v7x TensorCores and the input DMA pipelines with compute.
        tile_rows = _round_up(_cdiv(rows, 2), _SUBLANE_ALIGN)
    else:
        tile_rows = rows                      # single full-array tile
    num_tiles = _cdiv(rows, tile_rows)

    # In-kernel sub-chunk size: bounds live f32 temporaries even for large tiles.
    chunk_rows = max(_SUBLANE_ALIGN,
                     _round_down(_CHUNK_ELEMS // lanes_padded, _SUBLANE_ALIGN))
    chunk_rows = min(chunk_rows, tile_rows)

    kernel = functools.partial(_focal_loss_kernel, gamma=gamma, alpha=alpha,
                               total_rows=rows, chunk_rows=chunk_rows)

    partials = pl.pallas_call(
        kernel,
        out_shape=jax.ShapeDtypeStruct((num_tiles, 1, lanes), jnp.float32),
        grid=(num_tiles,),
        in_specs=[
            pl.BlockSpec((tile_rows, lanes), lambda i: (i, 0)),
            pl.BlockSpec((tile_rows, lanes), lambda i: (i, 0)),
        ],
        # Each grid step owns its own (1, lanes) partial-sum block -> no
        # cross-step accumulator, so the grid axis is truly "parallel".
        out_specs=pl.BlockSpec((None, 1, lanes), lambda i: (i, 0, 0)),
        compiler_params=pltpu.CompilerParams(
            dimension_semantics=("parallel",),
            vmem_limit_bytes=_VMEM_LIMIT_BYTES),
    )(pred2d, targ2d)

    # Tiny final reduce + mean in the wrapper (num_tiles * lanes floats).
    return jnp.sum(partials) / jnp.float32(total)


def _focal_loss_ref(prediction, target, gamma=2.0, alpha=None):
    """Plain-JAX reference mirroring the PyTorch forward."""
    x = prediction.astype(jnp.float32)
    t = target.astype(jnp.float32)
    bce = jnp.maximum(x, 0.0) - x * t + jnp.log1p(jnp.exp(-jnp.abs(x)))
    p = jax.nn.sigmoid(x)
    p_t = t * p + (1.0 - t) * (1.0 - p)
    mod = jnp.power(1.0 - p_t, gamma) if gamma else 1.0
    aw = (t * alpha + (1.0 - t) * (1.0 - alpha)) if alpha is not None else 1.0
    return jnp.mean(mod * aw * bce)


if __name__ == "__main__":
    key = jax.random.PRNGKey(0)
    k1, k2 = jax.random.split(key)

    def _check(pred, targ, gamma, alpha, rtol=1e-5, atol=1e-6):
        out = jax.block_until_ready(focal_loss(pred, targ, gamma=gamma, alpha=alpha))
        ref = _focal_loss_ref(pred, targ, gamma=gamma, alpha=alpha)
        assert jnp.allclose(out, ref, rtol=rtol, atol=atol), (out, ref, gamma, alpha)

    # [batch_size, num_anchors, num_classes] — module defaults (gamma=2, alpha=None).
    B, A, C = 2, 8, 128
    pred = jax.random.normal(k1, (B, A, C), jnp.float32) * 2.0
    targ = jax.random.bernoulli(k2, 0.1, (B, A, C)).astype(jnp.float32)
    _check(pred, targ, 2.0, None)
    _check(pred, targ, 2.0, 0.25)          # alpha-weighted branch
    _check(pred, targ, 0.0, None)          # gamma falsy -> plain mean BCE

    # Odd shape: total not a multiple of 128 -> (rows, C) view, no pad, no copy.
    p2 = jax.random.normal(k1, (2, 13, 21), jnp.float32) * 3.0
    t2 = jax.random.bernoulli(k2, 0.2, (2, 13, 21)).astype(jnp.float32)
    _check(p2, t2, 2.0, 0.5)

    # Multiple grid tiles with a partial (in-kernel masked) last tile.
    p3 = jax.random.normal(k1, (3, 100, 128), jnp.float32)
    t3 = jax.random.bernoulli(k2, 0.3, (3, 100, 128)).astype(jnp.float32)
    _check(p3, t3, 2.0, None)

    # Narrow dtypes streamed at native width (bf16 logits, int8 one-hot targets);
    # also exercises the multi-chunk in-kernel fori_loop (2 tiles x 2 chunks).
    p4 = (jax.random.normal(k1, (8, 512, 128), jnp.float32) * 2.0).astype(jnp.bfloat16)
    t4 = jax.random.bernoulli(k2, 0.1, (8, 512, 128)).astype(jnp.int8)
    _check(p4, t4, 2.0, 0.25, rtol=1e-4, atol=1e-5)

    print("KERNEL_OK")
</pallas_src>

<mosaic_0001>
module attributes {stable_mosaic.version = 11 : i64} {
  func.func @_focal_loss_kernel(%arg0: i32, %arg1: memref<16x128xf32, #tpu.memory_space<vmem>>, %arg2: memref<16x128xf32, #tpu.memory_space<vmem>>, %arg3: memref<1x1x128xf32, #tpu.memory_space<vmem>>) attributes {dimension_semantics = [#tpu.dimension_semantics<parallel>], iteration_bounds = array<i64: 1>, scalar_prefetch = 0 : i64, scratch_operands = 0 : i64, tpu.core_type = #tpu.core_type<tc>, window_params = [{transform_indices = @transform_0, window_bounds = array<i64: 16, 128>}, {transform_indices = @transform_1, window_bounds = array<i64: 16, 128>}, {transform_indices = @transform_2, window_bounds = array<i64: 1, 1, 128>}]} {
    %c16_i32 = arith.constant 16 : i32
    %0 = arith.muli %arg0, %c16_i32 : i32
    %c16_i32_0 = arith.constant 16 : i32
    %1 = arith.subi %c16_i32_0, %0 : i32
    %cst = arith.constant 0.000000e+00 : f32
    %2 = vector.broadcast %cst : f32 to vector<1x128xf32>
    %c0 = arith.constant 0 : index
    %c0_1 = arith.constant 0 : index
    %3 = vector.load %arg1[%c0, %c0_1] : memref<16x128xf32, #tpu.memory_space<vmem>>, vector<16x128xf32>
    %c0_2 = arith.constant 0 : index
    %c0_3 = arith.constant 0 : index
    %4 = vector.load %arg2[%c0_2, %c0_3] : memref<16x128xf32, #tpu.memory_space<vmem>>, vector<16x128xf32>
    %5 = tpu.iota {dimensions = array<i32: 0>} : vector<16x128xi32>
    %c0_i32 = arith.constant 0 : i32
    %6 = arith.subi %1, %c0_i32 : i32
    %7 = math.absf %3 : vector<16x128xf32>
    %cst_4 = arith.constant 0.000000e+00 : f32
    %8 = vector.broadcast %cst_4 : f32 to vector<16x128xf32>
    %9 = arith.subf %8, %7 : vector<16x128xf32>
    %10 = math.exp %9 : vector<16x128xf32>
    %cst_5 = arith.constant 1.000000e+00 : f32
    %11 = vector.broadcast %cst_5 : f32 to vector<16x128xf32>
    %12 = arith.addf %11, %10 : vector<16x128xf32>
    %cst_6 = arith.constant 1.000000e+00 : f32
    %13 = vector.broadcast %cst_6 : f32 to vector<16x128xf32>
    %14 = arith.divf %13, %12 : vector<16x128xf32>
    %cst_7 = arith.constant 0.000000e+00 : f32
    %15 = vector.broadcast %cst_7 : f32 to vector<16x128xf32>
    %16 = arith.maximumf %3, %15 : vector<16x128xf32>
    %17 = arith.mulf %3, %4 : vector<16x128xf32>
    %18 = arith.subf %16, %17 : vector<16x128xf32>
    %19 = math.log1p %10 : vector<16x128xf32>
    %20 = arith.addf %18, %19 : vector<16x128xf32>
    %cst_8 = arith.constant 0.000000e+00 : f32
    %21 = vector.broadcast %cst_8 : f32 to vector<16x128xf32>
    %22 = arith.cmpf oge, %3, %21 : vector<16x128xf32>
    %23 = arith.mulf %10, %14 : vector<16x128xf32>
    %24 = arith.select %22, %14, %23 : vector<16x128xi1>, vector<16x128xf32>
    %25 = arith.addf %24, %4 : vector<16x128xf32>
    %26 = arith.mulf %24, %4 : vector<16x128xf32>
    %cst_9 = arith.constant 2.000000e+00 : f32
    %27 = vector.broadcast %cst_9 : f32 to vector<16x128xf32>
    %28 = arith.mulf %27, %26 : vector<16x128xf32>
    %29 = arith.subf %25, %28 : vector<16x128xf32>
    %30 = arith.mulf %29, %29 : vector<16x128xf32>
    %31 = arith.mulf %30, %20 : vector<16x128xf32>
    %32 = vector.broadcast %6 : i32 to vector<16x128xi32>
    %33 = arith.cmpi slt, %5, %32 : vector<16x128xi32>
    %cst_10 = arith.constant 0.000000e+00 : f32
    %34 = vector.broadcast %cst_10 : f32 to vector<16x128xf32>
    %35 = arith.select %33, %31, %34 : vector<16x128xi1>, vector<16x128xf32>
    %cst_11 = arith.constant dense<0.000000e+00> : vector<128xf32>
    %36 = vector.multi_reduction <add>, %35, %cst_11 [0] : vector<16x128xf32> to vector<128xf32>
    %37 = vector.shape_cast %36 : vector<128xf32> to vector<1x128xf32>
    %38 = arith.addf %2, %37 : vector<1x128xf32>
    %c0_12 = arith.constant 0 : index
    %c0_13 = arith.constant 0 : index
    %c0_14 = arith.constant 0 : index
    %39 = vector.load %arg3[%c0_12, %c0_13, %c0_14] : memref<1x1x128xf32, #tpu.memory_space<vmem>>, vector<1x1x128xf32>
    %40 = vector.shape_cast %39 : vector<1x1x128xf32> to vector<1x128xf32>
    %41 = vector.shape_cast %38 : vector<1x128xf32> to vector<1x1x128xf32>
    tpu.vector_store %arg3[%c0_12, %c0_13, %c0_14], %41 {strides = array<i32>} : memref<1x1x128xf32, #tpu.memory_space<vmem>>, vector<1x1x128xf32>,
    return
  }
  func.func @transform_0(%arg0: i32) -> (i32, i32) {
    %c0_i32 = arith.constant 0 : i32
    %c0_i32_0 = arith.constant 0 : i32
    return %arg0, %c0_i32 : i32, i32
  }
  func.func @transform_1(%arg0: i32) -> (i32, i32) {
    %c0_i32 = arith.constant 0 : i32
    %c0_i32_0 = arith.constant 0 : i32
    return %arg0, %c0_i32 : i32, i32
  }
  func.func @transform_2(%arg0: i32) -> (i32, i32, i32) {
    %c0_i32 = arith.constant 0 : i32
    %c0_i32_0 = arith.constant 0 : i32
    %c0_i32_1 = arith.constant 0 : i32
    return %arg0, %c0_i32, %c0_i32_0 : i32, i32, i32
  }
}

</mosaic_0001>

<llo_original>
// kernel: focal_loss.1
$region0: #{focal_loss.1}
  #allocation0 [shape = 'u32[]', space=smem, size = 0x4, offset = 0x4, fixed_abs, tag = 'smem constant byte address 0x4 - core index']
  #allocation1 [shape = 'u32[144,128]{1,0:T(1,128)}', space=vmem, size = 0x12000, scoped, tag = 'internal scratch']
  %s0 = inlined_call_operand.hbm [shape: f32[16,128], index: 0, kind: input, shape index: {}]
  %s1 = inlined_call_operand.hbm [shape: f32[16,128], index: 1, kind: input, shape index: {}]
  %s2 = inlined_call_operand.vmem [shape: f32[1,1,128], index: 2, kind: output, shape index: {}]
  %s3 = sld [smem:[#allocation0]]
  $region26: #{focal_loss.1} parent=0
    _
  %s5 = ssub.s32 1, %s3
  %s6 = scalar_select 0, %s5, %s3
  $region1: #{focal_loss.1} parent=0
    #allocation2 [shape = 'u8[8192]{0}', space=vmem, size = 0x2000, scoped, tag = 'input window, operand 0, single buffered']
    #allocation3 [shape = 's32[1]{0}', space=sflag, size = 0x4, scoped, tag = 'scoped memory for focal_loss.1']
    #allocation4 [shape = 'u8[8192]{0}', space=vmem, size = 0x2000, scoped, tag = 'input window, operand 1, single buffered']
    #allocation5 [shape = 's32[1]{0}', space=sflag, size = 0x4, scoped, tag = 'scoped memory for focal_loss.1']
    %7 = vsyncpa [#allocation3], 0
    %8 = vsyncpa [#allocation5], 0
    // Predicated region
    $region2: #{focal_loss.1} parent=1 // pred_check
      _
    $region3: #{focal_loss.1} parent=1 // pred_check_branch
      %10 = sbr.rel (0) target = $region5
    $region4: #{focal_loss.1} parent=1 // pred_region
      %s12 = ssub.s32 256, 256
      %13 = vsyncadd [#allocation3], %s12
      %s14 = sshll.u32 [#allocation2], 4
      %s15 = int_to_ptr.vmem [resolvable:$true] %s14
      %20 = dma.hbm_to_vmem [thread:$0]  %s0, 256, %s15, [#allocation3], 128, 128, 8
    $region5: #{focal_loss.1} parent=1 // pred_fallthru
      _
    // Predicated region
    $region6: #{focal_loss.1} parent=1 // pred_check
      _
    $region7: #{focal_loss.1} parent=1 // pred_check_branch
      %22 = sbr.rel (0) target = $region9
    $region8: #{focal_loss.1} parent=1 // pred_region
      %s24 = ssub.s32 256, 256
      %25 = vsyncadd [#allocation5], %s24
      %s26 = sshll.u32 [#allocation4], 4
      %s27 = int_to_ptr.vmem [resolvable:$true] %s26
      %32 = dma.hbm_to_vmem [thread:$0]  %s1, 256, %s27, [#allocation5], 128, 128, 8
    $region9: #{focal_loss.1} parent=1 // pred_fallthru
      _
    // Predicated region
    $region10: #{focal_loss.1} parent=1 // pred_check
      _
    $region11: #{focal_loss.1} parent=1 // pred_check_branch
      %34 = sbr.rel (0) target = $region13
    $region12: #{focal_loss.1} parent=1 // pred_region
      %35 = dma.done [#allocation3], 256
    $region13: #{focal_loss.1} parent=1 // pred_fallthru
      _
    // Predicated region
    $region14: #{focal_loss.1} parent=1 // pred_check
      _
    $region15: #{focal_loss.1} parent=1 // pred_check_branch
      %37 = sbr.rel (0) target = $region17
    $region16: #{focal_loss.1} parent=1 // pred_region
      %38 = dma.done [#allocation5], 256
    $region17: #{focal_loss.1} parent=1 // pred_fallthru
      _
    %s39 = smul.u32 0, 16
    %s40 = ssub.s32 16, %s39
    %v41 = vld [vmem:[#allocation2] sm:$0xff]
    %v42 = vld [vmem:[#allocation2 + $0x8] sm:$0xff]
    %v43 = vld [vmem:[#allocation4] sm:$0xff]
    %v44 = vld [vmem:[#allocation4 + $0x8] sm:$0xff]
    %v45 = vlaneseq
    %v46 = vshrl.u32 %v45, 7
    %v47 = vadd.s32 %v46, 8
    %v48 = vand.u32 2147483647, %v41
    %v49 = vand.u32 2147483647, %v42
    %v50 = vsub.f32 0.0, %v48
    %v51 = vsub.f32 0.0, %v49
    %v52 = vmul.f32 %v50, 1.442695
    %v53 = vpow.pop %v52
    %v54 = vmul.f32 %v51, 1.442695
    %v55 = vpow.pop %v54
    %v56 = vadd.f32 %v53, 1.0
    %v57 = vadd.f32 %v55, 1.0
    %v58 = vrcp.pop %v56
    %v59 = vmul.f32 1.0, %v58
    %v60 = vrcp.pop %v57
    %v61 = vmul.f32 1.0, %v60
    %v62 = vmax.f32 %v41, 0.0
    %v63 = vmax.f32 %v42, 0.0
    %v64 = vmul.f32 %v41, %v43
    %v65 = vmul.f32 %v42, %v44
    %v66 = vsub.f32 %v62, %v64
    %v67 = vsub.f32 %v63, %v65
    %v68 = vadd.f32 %v53, 1.0
    %v69 = vlog2.pop %v68
    %v70 = vmul.f32 %v69, 0.6931472
    %v71 = vmul.f32 -0.5, %v53
    %v72 = vadd.f32 %v71, 1.0
    %v73 = vmul.f32 %v72, %v53
    %v74 = vand.u32 2147483647, %v53
    %vm75 = vcmp.lt.f32.partialorder %v74, 0.0004427343
    %v76 = vsel %vm75, %v73, %v70
    %v77 = vadd.f32 %v55, 1.0
    %v78 = vlog2.pop %v77
    %v79 = vmul.f32 %v78, 0.6931472
    %v80 = vmul.f32 -0.5, %v55
    %v81 = vadd.f32 %v80, 1.0
    %v82 = vmul.f32 %v81, %v55
    %v83 = vand.u32 2147483647, %v55
    %vm84 = vcmp.lt.f32.partialorder %v83, 0.0004427343
    %v85 = vsel %vm84, %v82, %v79
    %v86 = vadd.f32 %v66, %v76
    %v87 = vadd.f32 %v67, %v85
    %vm88 = vcmp.ge.f32.partialorder %v41, 0.0
    %vm89 = vcmp.ge.f32.partialorder %v42, 0.0
    %v90 = vmul.f32 %v53, %v59
    %v91 = vmul.f32 %v55, %v61
    %v92 = vsel %vm88, %v59, %v90
    %v93 = vsel %vm89, %v61, %v91
    %v94 = vadd.f32 %v92, %v43
    %v95 = vadd.f32 %v93, %v44
    %v96 = vmul.f32 %v92, %v43
    %v97 = vmul.f32 %v93, %v44
    %v98 = vmul.f32 %v96, 2.0
    %v99 = vmul.f32 %v97, 2.0
    %v100 = vsub.f32 %v94, %v98
    %v101 = vsub.f32 %v95, %v99
    %v102 = vmul.f32 %v100, %v100
    %v103 = vmul.f32 %v101, %v101
    %v104 = vmul.f32 %v102, %v86
    %v105 = vmul.f32 %v103, %v87
    %v106 = vstv %s40
    %vm107 = vcmp.lt.s32.totalorder %v46, %v106
    %vm108 = vcmp.lt.s32.totalorder %v47, %v106
    %v109 = vsel %vm107, %v104, 0.0
    %v110 = vsel %vm108, %v105, 0.0
    %v111 = vadd.f32 %v109, %v110
    %v112 = vrot.slane %v111, 4
    %v113 = vadd.f32 %v111, %v112
    %v114 = vrot.slane %v113, 2
    %v115 = vadd.f32 %v113, %v114
    %v116 = vrot.slane %v115, 1
    %v117 = vadd.f32 %v115, %v116
    %v118 = vadd.f32 %v117, 0.0
    %119 = vst [vmem:[%s2] sm:$0x1] %v118
    // Predicated region
    $region18: #{focal_loss.1} parent=1 // pred_check
      _
    $region19: #{focal_loss.1} parent=1 // pred_check_branch
      %121 = sbr.rel (0) target = $region21
    $region20: #{focal_loss.1} parent=1 // pred_region
      _
    $region21: #{focal_loss.1} parent=1 // pred_fallthru
      _
    // Predicated region
    $region22: #{focal_loss.1} parent=1 // pred_check
      _
    $region23: #{focal_loss.1} parent=1 // pred_check_branch
      %123 = sbr.rel (0) target = $region25
    $region24: #{focal_loss.1} parent=1 // pred_region
      _
    $region25: #{focal_loss.1} parent=1 // pred_fallthru
      _
    %124 = vsyncpa [#allocation3], 1
    %125 = vsyncpa [#allocation5], 1

</llo_original>
